<compile_context>
chip_gen: v5e
topology: v5e:2x2
jax: 0.10.0
libtpu: 0.0.40
codegen_flags: <defaults>
</compile_context>

<pallas_src>
import functools

import jax
import jax.numpy as jnp
from jax import lax
from jax.experimental import pallas as pl
from jax.experimental.pallas import tpu as pltpu

EPS = 1e-5
MOMENTUM = 0.9


# ---------------------------------------------------------------------------
# Generation-aware sizing
# ---------------------------------------------------------------------------

def _round_up(a, b):
    return (a + b - 1) // b * b


def _vmem_capacity_bytes():
    try:
        info = pltpu.get_tpu_info()
        cap = getattr(info, "vmem_capacity_bytes", None)
        if cap:
            return int(cap)
    except Exception:
        pass
    return 64 * 1024 * 1024          # conservative default (v7x per-core VMEM)


_VMEM_CAP = _vmem_capacity_bytes()
# Headroom under per-core physical VMEM (v5e/v6e 128 MiB -> 96 MiB, v7x 64 MiB -> 48 MiB).
_VMEM_LIMIT = min((3 * _VMEM_CAP) // 4, 96 * 1024 * 1024)
# Bigger blocks amortize the ~0.35us/grid-step overhead; norm-pass worst case is
# 2 double-buffered (in + out) blocks -> 4 * block must stay under the limit.
_TARGET_BLOCK = 16 * 1024 * 1024 if _VMEM_CAP >= 96 * 1024 * 1024 else 8 * 1024 * 1024
# Whole-tensor fused path when X (as f32) plus temporaries comfortably fits.
_FUSED_LIMIT = max(1 * 1024 * 1024, _VMEM_LIMIT // 8)


def _pick_tile(total, align, max_tile):
    """Largest tile t <= max_tile with t % align == 0 and total % t == 0."""
    if total <= max_tile:
        return total
    t = (max_tile // align) * align
    while t >= align:
        if total % t == 0:
            return t
        t -= align
    return total


def _compute_dtype(dtype):
    # bf16 inputs are normalized in native bf16 (fewer VALU ops / vregs on v6e/v7x;
    # Mosaic legalizes bf16 math on v5e so it stays correct there). Everything else f32.
    return jnp.bfloat16 if jnp.dtype(dtype) == jnp.dtype(jnp.bfloat16) else jnp.float32


def _tiles_4d(N, C, HW_pad, itemsize):
    target_elems = max(1, _TARGET_BLOCK // itemsize)
    max_thw = max(128, ((target_elems // max(C, 1)) // 128) * 128)
    thw = _pick_tile(HW_pad, 128, max_thw)
    bn = _pick_tile(N, 1, max(1, target_elems // max(C * thw, 1)))
    return bn, thw


def _tile_2d(N_pad, C, itemsize):
    max_rows = max(8, ((_TARGET_BLOCK // max(itemsize * C, 1)) // 8) * 8)
    return _pick_tile(N_pad, 8, max_rows)


# ---------------------------------------------------------------------------
# Fused single-call path (whole tensor in VMEM): read X once, write Y once.
# ---------------------------------------------------------------------------

def _bn4d_fused_kernel(x_ref, gamma_ref, beta_ref, y_ref, mean_ref, var_ref, *, count):
    xf = x_ref[...].astype(jnp.float32)                              # (N, C, HW)
    s = jnp.sum(jnp.sum(xf, axis=2, keepdims=True), axis=0)          # (C, 1)
    sq = jnp.sum(jnp.sum(xf * xf, axis=2, keepdims=True), axis=0)    # (C, 1)
    mean = s * (1.0 / count)
    # Unbiased (n-1) variance, like torch.var(); count==1 -> inf/nan, same as torch.
    var = jnp.maximum((sq - s * mean) / (count - 1.0), 0.0)
    inv_std = lax.rsqrt(var + EPS)
    scale = gamma_ref[...] * inv_std                                 # (C, 1)
    shift = beta_ref[...] - mean * scale
    y_ref[...] = (xf * scale[None] + shift[None]).astype(y_ref.dtype)
    mean_ref[...] = mean
    var_ref[...] = var


def _bn2d_fused_kernel(x_ref, gamma_ref, beta_ref, y_ref, mean_ref, var_ref, *, count):
    xf = x_ref[...].astype(jnp.float32)                              # (N, C)
    s = jnp.sum(xf, axis=0, keepdims=True)                           # (1, C)
    sq = jnp.sum(xf * xf, axis=0, keepdims=True)
    mean = s * (1.0 / count)
    var = jnp.maximum((sq - s * mean) / (count - 1.0), 0.0)
    inv_std = lax.rsqrt(var + EPS)
    scale = gamma_ref[...] * inv_std                                 # (1, C)
    shift = beta_ref[...] - mean * scale
    y_ref[...] = (xf * scale + shift).astype(y_ref.dtype)
    mean_ref[...] = mean
    var_ref[...] = var


def _bn_fused_4d(x3, gamma_c1, beta_c1, count):
    N, C, HW = x3.shape
    kern = functools.partial(_bn4d_fused_kernel, count=float(count))
    return pl.pallas_call(
        kern,
        out_shape=(jax.ShapeDtypeStruct((N, C, HW), x3.dtype),
                   jax.ShapeDtypeStruct((C, 1), jnp.float32),
                   jax.ShapeDtypeStruct((C, 1), jnp.float32)),
        compiler_params=pltpu.CompilerParams(vmem_limit_bytes=_VMEM_LIMIT),
    )(x3, gamma_c1, beta_c1)


def _bn_fused_2d(x2, gamma_1c, beta_1c, count):
    N, C = x2.shape
    kern = functools.partial(_bn2d_fused_kernel, count=float(count))
    return pl.pallas_call(
        kern,
        out_shape=(jax.ShapeDtypeStruct((N, C), x2.dtype),
                   jax.ShapeDtypeStruct((1, C), jnp.float32),
                   jax.ShapeDtypeStruct((1, C), jnp.float32)),
        compiler_params=pltpu.CompilerParams(vmem_limit_bytes=_VMEM_LIMIT),
    )(x2, gamma_1c, beta_1c)


# ---------------------------------------------------------------------------
# Tiled 4-D path: x viewed as (N, C, HW_pad); reduce over (N, HW) per channel.
# ---------------------------------------------------------------------------

def _bn4d_stats_kernel(x_ref, sum_ref, sumsq_ref):
    # x_ref: (bn, C, thw); sum/sumsq_ref: (1, C, 1) — this batch-tile's own slab,
    # accumulated across the spatial ("arbitrary") grid axis.
    @pl.when(pl.program_id(1) == 0)
    def _():
        sum_ref[...] = jnp.zeros_like(sum_ref)
        sumsq_ref[...] = jnp.zeros_like(sumsq_ref)

    x = x_ref[...].astype(jnp.float32)
    s = jnp.sum(jnp.sum(x, axis=2, keepdims=True), axis=0)          # (C, 1)
    sq = jnp.sum(jnp.sum(x * x, axis=2, keepdims=True), axis=0)     # (C, 1)
    sum_ref[...] += s[None]
    sumsq_ref[...] += sq[None]


def _bn4d_norm_kernel(x_ref, s_ref, q_ref, gamma_ref, beta_ref, y_ref, *,
                      count, compute_dtype):
    # Finalize fused into the norm pass: slabs/gamma/beta are tiny resident inputs,
    # scale/shift recomputed per step (negligible; safe under "parallel" semantics).
    s = jnp.sum(s_ref[...], axis=0)                                  # (C, 1)
    q = jnp.sum(q_ref[...], axis=0)
    mean = s * (1.0 / count)
    var = jnp.maximum((q - s * mean) / (count - 1.0), 0.0)
    scale = gamma_ref[...] * lax.rsqrt(var + EPS)                    # (C, 1) f32
    shift = beta_ref[...] - mean * scale
    scale = scale.astype(compute_dtype)[None]                        # (1, C, 1)
    shift = shift.astype(compute_dtype)[None]
    x = x_ref[...].astype(compute_dtype)
    y_ref[...] = (x * scale + shift).astype(y_ref.dtype)


def _bn_stats_4d(x3):
    N, C, HWp = x3.shape
    bn, thw = _tiles_4d(N, C, HWp, x3.dtype.itemsize)
    nb = N // bn
    grid = (nb, HWp // thw)
    return pl.pallas_call(
        _bn4d_stats_kernel,
        out_shape=(jax.ShapeDtypeStruct((nb, C, 1), jnp.float32),
                   jax.ShapeDtypeStruct((nb, C, 1), jnp.float32)),
        grid_spec=pltpu.PrefetchScalarGridSpec(
            num_scalar_prefetch=0,
            grid=grid,
            in_specs=[pl.BlockSpec((bn, C, thw), lambda i, j: (i, 0, j))],
            out_specs=(pl.BlockSpec((1, C, 1), lambda i, j: (i, 0, 0)),
                       pl.BlockSpec((1, C, 1), lambda i, j: (i, 0, 0)))),
        compiler_params=pltpu.CompilerParams(
            dimension_semantics=("parallel", "arbitrary"),
            vmem_limit_bytes=_VMEM_LIMIT),
        cost_estimate=pl.CostEstimate(
            flops=3 * N * C * HWp, transcendentals=0,
            bytes_accessed=N * C * HWp * x3.dtype.itemsize + 2 * nb * C * 4),
    )(x3)


def _bn_norm_4d(x3, s_slab, q_slab, gamma_c1, beta_c1, count):
    N, C, HWp = x3.shape
    nb = s_slab.shape[0]
    bn, thw = _tiles_4d(N, C, HWp, x3.dtype.itemsize)
    grid = (N // bn, HWp // thw)
    kern = functools.partial(_bn4d_norm_kernel, count=float(count),
                             compute_dtype=_compute_dtype(x3.dtype))
    return pl.pallas_call(
        kern,
        out_shape=jax.ShapeDtypeStruct((N, C, HWp), x3.dtype),
        grid_spec=pltpu.PrefetchScalarGridSpec(
            num_scalar_prefetch=0,
            grid=grid,
            in_specs=[pl.BlockSpec((bn, C, thw), lambda i, j: (i, 0, j)),
                      pl.BlockSpec((nb, C, 1), lambda i, j: (0, 0, 0)),
                      pl.BlockSpec((nb, C, 1), lambda i, j: (0, 0, 0)),
                      pl.BlockSpec((C, 1), lambda i, j: (0, 0)),
                      pl.BlockSpec((C, 1), lambda i, j: (0, 0))],
            out_specs=pl.BlockSpec((bn, C, thw), lambda i, j: (i, 0, j))),
        compiler_params=pltpu.CompilerParams(
            dimension_semantics=("parallel", "parallel"),
            vmem_limit_bytes=_VMEM_LIMIT),
        cost_estimate=pl.CostEstimate(
            flops=2 * N * C * HWp, transcendentals=C,
            bytes_accessed=2 * N * C * HWp * x3.dtype.itemsize),
    )(x3, s_slab, q_slab, gamma_c1, beta_c1)


# ---------------------------------------------------------------------------
# Tiled 2-D (fully-connected) path: x is (N_pad, C); reduce over rows per channel.
# ---------------------------------------------------------------------------

def _bn2d_stats_kernel(x_ref, sum_ref, sumsq_ref):
    # x_ref: (tn, C); sum/sumsq_ref: (1, 1, C) — one slab per row-tile (no revisit),
    # so the single grid axis can be fully "parallel".
    x = x_ref[...].astype(jnp.float32)
    sum_ref[...] = jnp.sum(x, axis=0, keepdims=True)[None]
    sumsq_ref[...] = jnp.sum(x * x, axis=0, keepdims=True)[None]


def _bn2d_norm_kernel(x_ref, s_ref, q_ref, gamma_ref, beta_ref, y_ref, *,
                      count, compute_dtype):
    s = jnp.sum(s_ref[...], axis=0)                                  # (1, C)
    q = jnp.sum(q_ref[...], axis=0)
    mean = s * (1.0 / count)
    var = jnp.maximum((q - s * mean) / (count - 1.0), 0.0)
    scale = gamma_ref[...] * lax.rsqrt(var + EPS)
    shift = beta_ref[...] - mean * scale
    x = x_ref[...].astype(compute_dtype)
    y_ref[...] = (x * scale.astype(compute_dtype)
                  + shift.astype(compute_dtype)).astype(y_ref.dtype)


def _bn_stats_2d(x2):
    Np, C = x2.shape
    tn = _tile_2d(Np, C, x2.dtype.itemsize)
    nb = Np // tn
    return pl.pallas_call(
        _bn2d_stats_kernel,
        out_shape=(jax.ShapeDtypeStruct((nb, 1, C), jnp.float32),
                   jax.ShapeDtypeStruct((nb, 1, C), jnp.float32)),
        grid_spec=pltpu.PrefetchScalarGridSpec(
            num_scalar_prefetch=0,
            grid=(nb,),
            in_specs=[pl.BlockSpec((tn, C), lambda i: (i, 0))],
            out_specs=(pl.BlockSpec((1, 1, C), lambda i: (i, 0, 0)),
                       pl.BlockSpec((1, 1, C), lambda i: (i, 0, 0)))),
        compiler_params=pltpu.CompilerParams(
            dimension_semantics=("parallel",),
            vmem_limit_bytes=_VMEM_LIMIT),
        cost_estimate=pl.CostEstimate(
            flops=3 * Np * C, transcendentals=0,
            bytes_accessed=Np * C * x2.dtype.itemsize + 2 * nb * C * 4),
    )(x2)


def _bn_norm_2d(x2, s_slab, q_slab, gamma_1c, beta_1c, count):
    Np, C = x2.shape
    nb = s_slab.shape[0]
    tn = _tile_2d(Np, C, x2.dtype.itemsize)
    kern = functools.partial(_bn2d_norm_kernel, count=float(count),
                             compute_dtype=_compute_dtype(x2.dtype))
    return pl.pallas_call(
        kern,
        out_shape=jax.ShapeDtypeStruct((Np, C), x2.dtype),
        grid_spec=pltpu.PrefetchScalarGridSpec(
            num_scalar_prefetch=0,
            grid=(Np // tn,),
            in_specs=[pl.BlockSpec((tn, C), lambda i: (i, 0)),
                      pl.BlockSpec((nb, 1, C), lambda i: (0, 0, 0)),
                      pl.BlockSpec((nb, 1, C), lambda i: (0, 0, 0)),
                      pl.BlockSpec((1, C), lambda i: (0, 0)),
                      pl.BlockSpec((1, C), lambda i: (0, 0))],
            out_specs=pl.BlockSpec((tn, C), lambda i: (i, 0))),
        compiler_params=pltpu.CompilerParams(
            dimension_semantics=("parallel",),
            vmem_limit_bytes=_VMEM_LIMIT),
        cost_estimate=pl.CostEstimate(
            flops=2 * Np * C, transcendentals=C,
            bytes_accessed=2 * Np * C * x2.dtype.itemsize),
    )(x2, s_slab, q_slab, gamma_1c, beta_1c)


# ---------------------------------------------------------------------------
# Module wrapper (training-mode forward of the PyTorch scratch BatchNorm)
# ---------------------------------------------------------------------------

class BatchNormPallas:
    """Mirrors BatchNorm(num_features, num_dims) training-mode forward."""

    def __init__(self, num_features, num_dims):
        assert num_dims in (2, 4)
        shape = (1, num_features) if num_dims == 2 else (1, num_features, 1, 1)
        self.num_dims = num_dims
        self.num_features = num_features
        self.gamma = jnp.ones(shape, jnp.float32)
        self.beta = jnp.zeros(shape, jnp.float32)
        self.moving_mean = jnp.zeros(shape, jnp.float32)
        self.moving_var = jnp.ones(shape, jnp.float32)
        self._force_tiled = False      # test hook: exercise the large-tensor path

    def __call__(self, X):
        C = self.num_features

        if self.num_dims == 2:
            N, Cx = X.shape
            assert Cx == C
            count = N
            gamma_1c = self.gamma.reshape(1, C).astype(jnp.float32)
            beta_1c = self.beta.reshape(1, C).astype(jnp.float32)

            if (N * C * 4 <= _FUSED_LIMIT) and not self._force_tiled:
                Y, mean_1c, var_1c = _bn_fused_2d(X, gamma_1c, beta_1c, count)
                mean = mean_1c.reshape(C)
                var = var_1c.reshape(C)
            else:
                Np = _round_up(N, 8)
                x2p = X if Np == N else jnp.pad(X, ((0, Np - N), (0, 0)))
                s_slab, q_slab = _bn_stats_2d(x2p)
                y2p = _bn_norm_2d(x2p, s_slab, q_slab, gamma_1c, beta_1c, count)
                Y = y2p if Np == N else y2p[:N]
                s_c = jnp.sum(s_slab, axis=(0, 1))
                q_c = jnp.sum(q_slab, axis=(0, 1))
                mean = s_c / count
                var = jnp.maximum((q_c - s_c * mean) / (count - 1.0), 0.0)
            mean_b, var_b = mean, var          # (C,), broadcasts against (1, C)
        else:
            N, Cx, H, W = X.shape
            assert Cx == C
            HW = H * W
            count = N * HW
            x3 = X.reshape(N, C, HW)           # free reshape, NO transpose
            gamma_c1 = self.gamma.reshape(C, 1).astype(jnp.float32)
            beta_c1 = self.beta.reshape(C, 1).astype(jnp.float32)

            if (N * C * HW * 4 <= _FUSED_LIMIT) and not self._force_tiled:
                y3, mean_c1, var_c1 = _bn_fused_4d(x3, gamma_c1, beta_c1, count)
                mean = mean_c1.reshape(C)
                var = var_c1.reshape(C)
            else:
                HWp = _round_up(HW, 128)
                x3p = x3 if HWp == HW else jnp.pad(x3, ((0, 0), (0, 0), (0, HWp - HW)))
                s_slab, q_slab = _bn_stats_4d(x3p)
                y3p = _bn_norm_4d(x3p, s_slab, q_slab, gamma_c1, beta_c1, count)
                y3 = y3p if HWp == HW else y3p[:, :, :HW]
                s_c = jnp.sum(s_slab, axis=(0, 2))
                q_c = jnp.sum(q_slab, axis=(0, 2))
                mean = s_c / count
                var = jnp.maximum((q_c - s_c * mean) / (count - 1.0), 0.0)
            Y = y3.reshape(N, C, H, W)
            mean_b = mean.reshape(1, C, 1, 1)
            var_b = var.reshape(1, C, 1, 1)

        self.moving_mean = MOMENTUM * self.moving_mean + (1.0 - MOMENTUM) * mean_b
        self.moving_var = MOMENTUM * self.moving_var + (1.0 - MOMENTUM) * var_b
        return Y


if __name__ == "__main__":
    k1, k2, k3, k4 = jax.random.split(jax.random.PRNGKey(0), 4)

    # ---- 4-D (conv) fused path: N, C, H, W = 2, 4, 16, 16 ----
    N, C, H, W = 2, 4, 16, 16
    X = jax.random.normal(k1, (N, C, H, W), dtype=jnp.float32) * 2.0 + 0.5
    bn4 = BatchNormPallas(num_features=C, num_dims=4)
    Y = jax.block_until_ready(bn4(X))
    jax.block_until_ready(bn4.moving_mean)
    jax.block_until_ready(bn4.moving_var)
    mean_ref = jnp.mean(X, axis=(0, 2, 3), keepdims=True)
    var_ref = jnp.var(X, axis=(0, 2, 3), keepdims=True, ddof=1)   # unbiased, like torch.var
    Y_ref = bn4.gamma * (X - mean_ref) / jnp.sqrt(var_ref + EPS) + bn4.beta
    assert Y.shape == (N, C, H, W)
    assert jnp.allclose(Y, Y_ref, atol=1e-4, rtol=1e-4), "4D fused output mismatch"
    mm_ref = (1.0 - MOMENTUM) * mean_ref
    mv_ref = MOMENTUM * jnp.ones((1, C, 1, 1)) + (1.0 - MOMENTUM) * var_ref
    assert jnp.allclose(bn4.moving_mean, mm_ref, atol=1e-5, rtol=1e-5), "4D moving_mean mismatch"
    assert jnp.allclose(bn4.moving_var, mv_ref, atol=1e-4, rtol=1e-4), "4D moving_var mismatch"

    # ---- 4-D tiled path (forced), non-128-multiple spatial -> zero-padded ----
    Nt, Ct, Ht, Wt = 2, 3, 10, 10
    Xt = jax.random.normal(k2, (Nt, Ct, Ht, Wt), dtype=jnp.float32) * 1.5 - 0.3
    bn4t = BatchNormPallas(num_features=Ct, num_dims=4)
    bn4t._force_tiled = True
    Yt = jax.block_until_ready(bn4t(Xt))
    mean_t = jnp.mean(Xt, axis=(0, 2, 3), keepdims=True)
    var_t = jnp.var(Xt, axis=(0, 2, 3), keepdims=True, ddof=1)
    Yt_ref = bn4t.gamma * (Xt - mean_t) / jnp.sqrt(var_t + EPS) + bn4t.beta
    assert jnp.allclose(Yt, Yt_ref, atol=1e-4, rtol=1e-4), "4D tiled output mismatch"
    assert jnp.allclose(bn4t.moving_mean, (1.0 - MOMENTUM) * mean_t,
                        atol=1e-5, rtol=1e-5), "4D tiled moving_mean mismatch"

    # ---- 2-D (fully-connected) fused path: N, C = 32, 8 ----
    N2, C2 = 32, 8
    X2 = jax.random.normal(k3, (N2, C2), dtype=jnp.float32) * 3.0 - 1.0
    bn2 = BatchNormPallas(num_features=C2, num_dims=2)
    Y2 = jax.block_until_ready(bn2(X2))
    mean2 = jnp.mean(X2, axis=0)
    var2 = jnp.var(X2, axis=0, ddof=1)
    Y2_ref = bn2.gamma * (X2 - mean2) / jnp.sqrt(var2 + EPS) + bn2.beta
    assert jnp.allclose(Y2, Y2_ref, atol=1e-4, rtol=1e-4), "2D fused output mismatch"

    # ---- 2-D tiled path (forced), N not a multiple of 8 -> zero-padded rows ----
    N3, C3 = 20, 8
    X3 = jax.random.normal(k4, (N3, C3), dtype=jnp.float32) * 0.7 + 2.0
    bn2t = BatchNormPallas(num_features=C3, num_dims=2)
    bn2t._force_tiled = True
    Y3 = jax.block_until_ready(bn2t(X3))
    mean3 = jnp.mean(X3, axis=0)
    var3 = jnp.var(X3, axis=0, ddof=1)
    Y3_ref = bn2t.gamma * (X3 - mean3) / jnp.sqrt(var3 + EPS) + bn2t.beta
    assert jnp.allclose(Y3, Y3_ref, atol=1e-4, rtol=1e-4), "2D tiled output mismatch"

    print("KERNEL_OK")
</pallas_src>

<mosaic_0001>
module attributes {stable_mosaic.version = 11 : i64} {
  func.func @_bn4d_fused_kernel(%arg0: memref<2x4x256xf32, #tpu.memory_space<vmem>>, %arg1: memref<4x1xf32, #tpu.memory_space<vmem>>, %arg2: memref<4x1xf32, #tpu.memory_space<vmem>>, %arg3: memref<2x4x256xf32, #tpu.memory_space<vmem>>, %arg4: memref<4x1xf32, #tpu.memory_space<vmem>>, %arg5: memref<4x1xf32, #tpu.memory_space<vmem>>) attributes {dimension_semantics = [], scalar_prefetch = 0 : i64, scratch_operands = 0 : i64, tpu.core_type = #tpu.core_type<tc>} {
    %c0 = arith.constant 0 : index
    %c0_0 = arith.constant 0 : index
    %c0_1 = arith.constant 0 : index
    %0 = vector.load %arg0[%c0, %c0_0, %c0_1] : memref<2x4x256xf32, #tpu.memory_space<vmem>>, vector<2x4x256xf32>
    %cst = arith.constant dense<0.000000e+00> : vector<2x4xf32>
    %1 = vector.multi_reduction <add>, %0, %cst [2] : vector<2x4x256xf32> to vector<2x4xf32>
    %2 = vector.shape_cast %1 : vector<2x4xf32> to vector<2x4x1xf32>
    %cst_2 = arith.constant dense<0.000000e+00> : vector<4x1xf32>
    %3 = vector.multi_reduction <add>, %2, %cst_2 [0] : vector<2x4x1xf32> to vector<4x1xf32>
    %4 = arith.mulf %0, %0 : vector<2x4x256xf32>
    %cst_3 = arith.constant dense<0.000000e+00> : vector<2x4xf32>
    %5 = vector.multi_reduction <add>, %4, %cst_3 [2] : vector<2x4x256xf32> to vector<2x4xf32>
    %6 = vector.shape_cast %5 : vector<2x4xf32> to vector<2x4x1xf32>
    %cst_4 = arith.constant dense<0.000000e+00> : vector<4x1xf32>
    %7 = vector.multi_reduction <add>, %6, %cst_4 [0] : vector<2x4x1xf32> to vector<4x1xf32>
    %cst_5 = arith.constant 0.001953125 : f32
    %8 = vector.broadcast %cst_5 : f32 to vector<4x1xf32>
    %9 = arith.mulf %3, %8 : vector<4x1xf32>
    %10 = arith.mulf %3, %9 : vector<4x1xf32>
    %11 = arith.subf %7, %10 : vector<4x1xf32>
    %cst_6 = arith.constant 5.110000e+02 : f32
    %12 = vector.broadcast %cst_6 : f32 to vector<4x1xf32>
    %13 = arith.divf %11, %12 : vector<4x1xf32>
    %cst_7 = arith.constant 0.000000e+00 : f32
    %14 = vector.broadcast %cst_7 : f32 to vector<4x1xf32>
    %15 = arith.maximumf %13, %14 : vector<4x1xf32>
    %cst_8 = arith.constant 9.99999974E-6 : f32
    %16 = vector.broadcast %cst_8 : f32 to vector<4x1xf32>
    %17 = arith.addf %15, %16 : vector<4x1xf32>
    %18 = math.rsqrt %17 : vector<4x1xf32>
    %c0_9 = arith.constant 0 : index
    %c0_10 = arith.constant 0 : index
    %19 = vector.load %arg1[%c0_9, %c0_10] : memref<4x1xf32, #tpu.memory_space<vmem>>, vector<4x1xf32>
    %20 = arith.mulf %19, %18 : vector<4x1xf32>
    %c0_11 = arith.constant 0 : index
    %c0_12 = arith.constant 0 : index
    %21 = vector.load %arg2[%c0_11, %c0_12] : memref<4x1xf32, #tpu.memory_space<vmem>>, vector<4x1xf32>
    %22 = arith.mulf %9, %20 : vector<4x1xf32>
    %23 = arith.subf %21, %22 : vector<4x1xf32>
    %24 = vector.shape_cast %20 : vector<4x1xf32> to vector<1x4x1xf32>
    %25 = vector.broadcast %24 : vector<1x4x1xf32> to vector<2x4x256xf32>
    %26 = arith.mulf %0, %25 : vector<2x4x256xf32>
    %27 = vector.shape_cast %23 : vector<4x1xf32> to vector<1x4x1xf32>
    %28 = vector.broadcast %27 : vector<1x4x1xf32> to vector<2x4x256xf32>
    %29 = arith.addf %26, %28 : vector<2x4x256xf32>
    %c0_13 = arith.constant 0 : index
    %c0_14 = arith.constant 0 : index
    %c0_15 = arith.constant 0 : index
    %30 = vector.load %arg3[%c0_13, %c0_14, %c0_15] : memref<2x4x256xf32, #tpu.memory_space<vmem>>, vector<2x4x256xf32>
    tpu.vector_store %arg3[%c0_13, %c0_14, %c0_15], %29 {strides = array<i32>} : memref<2x4x256xf32, #tpu.memory_space<vmem>>, vector<2x4x256xf32>,
    %c0_16 = arith.constant 0 : index
    %c0_17 = arith.constant 0 : index
    %31 = vector.load %arg4[%c0_16, %c0_17] : memref<4x1xf32, #tpu.memory_space<vmem>>, vector<4x1xf32>
    tpu.vector_store %arg4[%c0_16, %c0_17], %9 {strides = array<i32>} : memref<4x1xf32, #tpu.memory_space<vmem>>, vector<4x1xf32>,
    %c0_18 = arith.constant 0 : index
    %c0_19 = arith.constant 0 : index
    %32 = vector.load %arg5[%c0_18, %c0_19] : memref<4x1xf32, #tpu.memory_space<vmem>>, vector<4x1xf32>
    tpu.vector_store %arg5[%c0_18, %c0_19], %15 {strides = array<i32>} : memref<4x1xf32, #tpu.memory_space<vmem>>, vector<4x1xf32>,
    return
  }
}

</mosaic_0001>

<llo_original>
// kernel: tpu_custom_call.1
$region0: #{tpu_custom_call.1}
  #allocation0 [shape = 'u32[]', space=smem, size = 0x4, offset = 0x4, fixed_abs, tag = 'smem constant byte address 0x4 - core index']
  #allocation1 [shape = 'u32[72,128]{1,0:T(1,128)}', space=vmem, size = 0x9000, scoped, tag = 'internal scratch']
  %s0 = inlined_call_operand.hbm [shape: f32[2,4,256], index: 0, kind: input, shape index: {}]
  %s1 = inlined_call_operand.vmem [shape: f32[4,1], index: 1, kind: input, shape index: {}]
  %s2 = inlined_call_operand.vmem [shape: f32[4,1], index: 2, kind: input, shape index: {}]
  %s3 = inlined_call_operand.hbm [shape: f32[2,4,256], index: 3, kind: output, shape index: {0}]
  %s4 = inlined_call_operand.vmem [shape: f32[4,1], index: 4, kind: output, shape index: {1}]
  %s5 = inlined_call_operand.vmem [shape: f32[4,1], index: 5, kind: output, shape index: {2}]
  %6 = xla_tuple %s3, %s4, %s5
  %s7 = sld [smem:[#allocation0]]
  $region42: #{tpu_custom_call.1} parent=0
    _
  %s9 = ssub.s32 1, %s7
  %s10 = scalar_select 0, %s9, %s7
  $region1: #{tpu_custom_call.1} parent=0
    #allocation2 [shape = 'u8[8192]{0}', space=vmem, size = 0x2000, scoped, tag = 'input window, operand 0, single buffered']
    #allocation3 [shape = 's32[1]{0}', space=sflag, size = 0x4, scoped, tag = 'scoped memory for tpu_custom_call.1']
    #allocation4 [shape = 's32[1]{0}', space=sflag, size = 0x4, scoped, tag = 'scoped memory for tpu_custom_call.1']
    #allocation5 [shape = 'u8[8192]{0}', space=vmem, size = 0x2000, scoped, tag = 'output window, operand 0, single buffered']
    %11 = vsyncpa [#allocation3], 0
    %12 = vsyncpa [#allocation4], 0
    // Predicated region
    $region2: #{tpu_custom_call.1} parent=1 // pred_check
      _
    $region3: #{tpu_custom_call.1} parent=1 // pred_check_branch
      %14 = sbr.rel (0) target = $region5
    $region4: #{tpu_custom_call.1} parent=1 // pred_region
      %16 = vsyncadd [#allocation3], 0
      %s17 = sshll.u32 %s0, 4
      %s18 = int_to_ptr.hbm [resolvable:$true] %s17
      %s19 = sshll.u32 [#allocation2], 4
      %s20 = int_to_ptr.vmem [resolvable:$true] %s19
      %25 = dma.hbm_to_vmem [thread:$0]  %s18, 256, %s20, [#allocation3], 128, 128, 8
    $region5: #{tpu_custom_call.1} parent=1 // pred_fallthru
      _
    // Predicated region
    $region6: #{tpu_custom_call.1} parent=1 // pred_check
      _
    $region7: #{tpu_custom_call.1} parent=1 // pred_check_branch
      %27 = sbr.rel (0) target = $region9
    $region8: #{tpu_custom_call.1} parent=1 // pred_region
      _
    $region9: #{tpu_custom_call.1} parent=1 // pred_fallthru
      _
    // Predicated region
    $region10: #{tpu_custom_call.1} parent=1 // pred_check
      _
    $region11: #{tpu_custom_call.1} parent=1 // pred_check_branch
      %29 = sbr.rel (0) target = $region13
    $region12: #{tpu_custom_call.1} parent=1 // pred_region
      _
    $region13: #{tpu_custom_call.1} parent=1 // pred_fallthru
      _
    // Predicated region
    $region14: #{tpu_custom_call.1} parent=1 // pred_check
      _
    $region15: #{tpu_custom_call.1} parent=1 // pred_check_branch
      %31 = sbr.rel (0) target = $region17
    $region16: #{tpu_custom_call.1} parent=1 // pred_region
      %33 = dma.done [#allocation3], 256
    $region17: #{tpu_custom_call.1} parent=1 // pred_fallthru
      _
    %v34 = vld [vmem:[#allocation2] sm:$0xff]
    %v35 = vld [vmem:[#allocation2 + $0x8] sm:$0xff]
    %38 = vst [vmem:[#allocation1] ss:$2 sm:$0xff] %v34
    %v39 = vld.sshfl [vmem:[#allocation1] sm:$0xff pattern:$0x75316420]
    %v40 = vld.sshfl [vmem:[#allocation1 + $0x8] sm:$0xff pattern:$0x75316420]
    %s41 = scalar_lea.vmem [#allocation1], 16
    %42 = vst [vmem:[%s41] ss:$2 sm:$0xff] %v35
    %v43 = vld.sshfl [vmem:[#allocation1 + $0x10] sm:$0xff pattern:$0x75316420]
    %v44 = vld.sshfl [vmem:[#allocation1 + $0x18] sm:$0xff pattern:$0x75316420]
    %vm49 = vcmask 1043456
    %v50 = vsel %vm49, %v39, 0.0
    %v51 = vsel %vm49, %v40, 0.0
    %v52 = vadd.f32 %v50, %v51
    %53 = vadd.xlane.f32.xlu0 %v52
    %v54 = vpop.xlane.xlu0 %53
    %v55 = vsel %vm49, %v43, 0.0
    %v56 = vsel %vm49, %v44, 0.0
    %v57 = vadd.f32 %v55, %v56
    %58 = vadd.xlane.f32.xlu0 %v57
    %v59 = vpop.xlane.xlu0 %58
    %v60 = vsel %vm49, %v54, 0.0
    %v61 = vsel %vm49, %v59, 0.0
    %v62 = vadd.f32 %v60, %v61
    %v63 = vmul.f32 %v34, %v34
    %v64 = vmul.f32 %v35, %v35
    %67 = vst [vmem:[#allocation1] ss:$2 sm:$0xff] %v63
    %v68 = vld.sshfl [vmem:[#allocation1] sm:$0xff pattern:$0x75316420]
    %v69 = vld.sshfl [vmem:[#allocation1 + $0x8] sm:$0xff pattern:$0x75316420]
    %s70 = scalar_lea.vmem [#allocation1], 16
    %71 = vst [vmem:[%s70] ss:$2 sm:$0xff] %v64
    %v72 = vld.sshfl [vmem:[#allocation1 + $0x10] sm:$0xff pattern:$0x75316420]
    %v73 = vld.sshfl [vmem:[#allocation1 + $0x18] sm:$0xff pattern:$0x75316420]
    %v78 = vsel %vm49, %v68, 0.0
    %v79 = vsel %vm49, %v69, 0.0
    %v80 = vadd.f32 %v78, %v79
    %81 = vadd.xlane.f32.xlu0 %v80
    %v82 = vpop.xlane.xlu0 %81
    %v83 = vsel %vm49, %v72, 0.0
    %v84 = vsel %vm49, %v73, 0.0
    %v85 = vadd.f32 %v83, %v84
    %86 = vadd.xlane.f32.xlu0 %v85
    %v87 = vpop.xlane.xlu0 %86
    %v88 = vsel %vm49, %v82, 0.0
    %v89 = vsel %vm49, %v87, 0.0
    %v90 = vadd.f32 %v88, %v89
    %v91 = vmul.f32 %v62, 0.001953125
    %v92 = vmul.f32 %v62, %v91
    %v93 = vsub.f32 %v90, %v92
    %v94 = vrcp.pop 511.0
    %v95 = vmul.f32 511.0, %v94
    %v96 = vsub.f32 1.0, %v95
    %v97 = vmul.f32 %v94, %v96
    %v98 = vadd.f32 %v94, %v97
    %vm99 = vweird.f32 %v94
    %v100 = vsel %vm99, %v94, %v98
    %v101 = vmul.f32 %v93, %v100
    %v102 = vmax.f32 %v101, 0.0
    %v103 = vadd.f32 %v102, 1e-05
    %v104 = vrsqrt.pop %v103
    %v105 = vmul.f32 %v104, %v103
    %v106 = vmul.f32 %v105, %v104
    %v107 = vmul.f32 0.5, %v106
    %v108 = vsub.f32 1.5, %v107
    %v109 = vmul.f32 %v104, %v108
    %vm110 = vweird.f32 %v103
    %vm111 = vweird.f32 %v104
    %vm112 = vmor %vm110, %vm111
    %v113 = vsel %vm112, %v104, %v109
    %v114 = vld [vmem:[%s1] sm:$0xf]
    %v115 = vmul.f32 %v114, %v113
    %v116 = vld [vmem:[%s2] sm:$0xf]
    %v117 = vmul.f32 %v91, %v115
    %v118 = vsub.f32 %v116, %v117
    %120 = vset.pattern.permute.xlu0 0
    %121 = vperm.xlu0 %120, %v115
    %v122 = vpop.permute.xlu0 %121
    %v124 = vunpack.c.l.s4 839922192
    %v125 = vunpack.c.0.s8 %v124
    %v126 = vperm.slane %v122, %v125
    %v128 = vmul.f32 %v34, %v126
    %v129 = vmul.f32 %v35, %v126
    %131 = vset.pattern.permute.xlu0 0
    %132 = vperm.xlu0 %131, %v118
    %v133 = vpop.permute.xlu0 %132
    %v135 = vunpack.c.l.s4 839922192
    %v136 = vunpack.c.0.s8 %v135
    %v137 = vperm.slane %v133, %v136
    %v139 = vadd.f32 %v128, %v137
    %v140 = vadd.f32 %v129, %v137
    %141 = vst [vmem:[#allocation5] sm:$0xff] %v139
    %142 = vst [vmem:[#allocation5 + $0x8] sm:$0xff] %v140
    %vm143 = vcmask 3072
    %144 = vst.msk [vmem:[%s4] sm:$0xf] %vm143, %v91
    %145 = vst.msk [vmem:[%s5] sm:$0xf] %vm143, %v102
    // Predicated region
    $region18: #{tpu_custom_call.1} parent=1 // pred_check
      _
    $region19: #{tpu_custom_call.1} parent=1 // pred_check_branch
      %147 = sbr.rel (0) target = $region21
    $region20: #{tpu_custom_call.1} parent=1 // pred_region
      %149 = vsyncadd [#allocation4], 0
      %s150 = sshll.u32 [#allocation5], 4
      %s151 = int_to_ptr.vmem [resolvable:$true] %s150
      %s152 = sshll.u32 %s3, 4
      %s153 = int_to_ptr.hbm [resolvable:$true] %s152
      %158 = dma.vmem_to_hbm [thread:$0]  %s151, 256, %s153, [#allocation4], 128, 128, 8
    $region21: #{tpu_custom_call.1} parent=1 // pred_fallthru
      _
    // Predicated region
    $region22: #{tpu_custom_call.1} parent=1 // pred_check
      _
    $region23: #{tpu_custom_call.1} parent=1 // pred_check_branch
      %160 = sbr.rel (0) target = $region25
    $region24: #{tpu_custom_call.1} parent=1 // pred_region
      _
    $region25: #{tpu_custom_call.1} parent=1 // pred_fallthru
      _
    // Predicated region
    $region26: #{tpu_custom_call.1} parent=1 // pred_check
      _
    $region27: #{tpu_custom_call.1} parent=1 // pred_check_branch
      %162 = sbr.rel (0) target = $region29
    $region28: #{tpu_custom_call.1} parent=1 // pred_region
      _
    $region29: #{tpu_custom_call.1} parent=1 // pred_fallthru
      _
    // Predicated region
    $region30: #{tpu_custom_call.1} parent=1 // pred_check
      _
    $region31: #{tpu_custom_call.1} parent=1 // pred_check_branch
      %164 = sbr.rel (0) target = $region33
    $region32: #{tpu_custom_call.1} parent=1 // pred_region
      %166 = dma.done [#allocation4], 256
    $region33: #{tpu_custom_call.1} parent=1 // pred_fallthru
      _
    // Predicated region
    $region34: #{tpu_custom_call.1} parent=1 // pred_check
      _
    $region35: #{tpu_custom_call.1} parent=1 // pred_check_branch
      %168 = sbr.rel (0) target = $region37
    $region36: #{tpu_custom_call.1} parent=1 // pred_region
      _
    $region37: #{tpu_custom_call.1} parent=1 // pred_fallthru
      _
    // Predicated region
    $region38: #{tpu_custom_call.1} parent=1 // pred_check
      _
    $region39: #{tpu_custom_call.1} parent=1 // pred_check_branch
      %170 = sbr.rel (0) target = $region41
    $region40: #{tpu_custom_call.1} parent=1 // pred_region
      _
    $region41: #{tpu_custom_call.1} parent=1 // pred_fallthru
      _
    %171 = vsyncpa [#allocation3], 1
    %172 = vsyncpa [#allocation4], 1

</llo_original>
